<compile_context>
chip_gen: v6e
topology: v6e:2x2x1
jax: 0.10.0
libtpu: 0.0.40
codegen_flags: <defaults>
</compile_context>

<pallas_src>
import numpy as np
import jax
import jax.numpy as jnp
from jax.experimental import pallas as pl
from jax.experimental.pallas import tpu as pltpu


# -----------------------------------------------------------------------------
# Pallas kernel: one (B_row, H, L) block of lane-packed images per grid step.
#   x_ref    : (B_row, H, L)     L = P_lane * W * C, channels fastest in lanes
#   m1_ref   : (3, L, L)         conv1 layer-1 vertical-tap matrices (block-diag)
#   m2_ref   : (3, L, L)         conv1 layer-2 vertical-tap matrices
#   wm1_ref  : (L, L)            mask 1x1 conv #1 (block-diag per pixel)
#   b1_ref   : (1, L)            mask 1x1 conv #1 bias (tiled per pixel)
#   wm2e_ref : (L, L)            mask 1x1 conv #2 with channel-broadcast columns
#   b2e_ref  : (1, L)            its bias (broadcast)
#   wm2m_ref : (L, PW)           mask 1x1 conv #2, narrow (C -> 1) for mask output
#   b2m_ref  : (1, PW)
#   out_ref  : (B_row, H, L)     out_B (lane-packed)
#   mask_ref : (B_row, H, PW)    mask1 (lane-packed)
# -----------------------------------------------------------------------------
def _sep_b_kernel(x_ref, m1_ref, m2_ref, wm1_ref, b1_ref,
                  wm2e_ref, b2e_ref, wm2m_ref, b2m_ref,
                  out_ref, mask_ref):
    Bb, H, L = x_ref.shape
    cdt = m1_ref.dtype                                   # MXU operand dtype

    x2 = x_ref[...].reshape(Bb * H, L).astype(jnp.float32)

    def conv3x3_refl_relu(t2, m_ref):
        # One unshifted LHS feeds all three vertical-tap matmuls; the dy=+-1
        # shifts (with per-image vertical reflection pad) are applied to the
        # OUTPUTS as sublane slices/concats -> no (H+2)-row padded input copy.
        tc = t2.astype(cdt)
        y0 = jnp.dot(tc, m_ref[0],
                     preferred_element_type=jnp.float32).reshape(Bb, H, L)
        y1 = jnp.dot(tc, m_ref[1],
                     preferred_element_type=jnp.float32).reshape(Bb, H, L)
        y2 = jnp.dot(tc, m_ref[2],
                     preferred_element_type=jnp.float32).reshape(Bb, H, L)
        # out[h] = y0[refl(h-1)] + y1[h] + y2[refl(h+1)]
        up = jnp.concatenate([y0[:, 1:2, :], y0[:, :H - 1, :]], axis=1)
        dn = jnp.concatenate([y2[:, 1:, :], y2[:, H - 2:H - 1, :]], axis=1)
        return jnp.maximum(up + y1 + dn, 0.0).reshape(Bb * H, L)

    # conv1: two reflection-padded 3x3 convs + ReLU
    feat = conv3x3_refl_relu(conv3x3_refl_relu(x2, m1_ref), m2_ref)   # (R, L) f32

    # Mask_learning: 1x1 -> tanh -> 1x1 -> sigmoid.  The channel broadcast is
    # folded into wm2e (replicated columns), so no extra broadcast matmul.
    fc = feat.astype(cdt)
    h = jnp.tanh(jnp.dot(fc, wm1_ref[...],
                         preferred_element_type=jnp.float32) + b1_ref[...])
    hc = h.astype(cdt)
    m_exp = jax.nn.sigmoid(jnp.dot(hc, wm2e_ref[...],
                                   preferred_element_type=jnp.float32) + b2e_ref[...])
    m_out = jax.nn.sigmoid(jnp.dot(hc, wm2m_ref[...],
                                   preferred_element_type=jnp.float32) + b2m_ref[...])

    out = m_exp * feat + x2
    out_ref[...] = out.reshape(Bb, H, L).astype(out_ref.dtype)
    mask_ref[...] = m_out.reshape(Bb, H, mask_ref.shape[-1]).astype(mask_ref.dtype)


# -----------------------------------------------------------------------------
# Parameter "compilation".
# -----------------------------------------------------------------------------
def _build_conv3x3_mats(w_khkwio, W):
    """Fold horizontal taps + horizontal reflection pad of a 3x3 conv into three
    (W*Cin, W*Cout) matrices (one per vertical tap).  w layout: [kh, kw, ci, co]."""
    kh, kw, Ci, Co = w_khkwio.shape
    assert kh == 3 and kw == 3
    idx = np.arange(-1, W + 1)
    idx = np.where(idx < 0, -idx, idx)
    idx = np.where(idx > W - 1, 2 * (W - 1) - idx, idx)
    P = np.zeros((W + 2, W), np.float32)
    P[np.arange(W + 2), idx] = 1.0
    # A[dx, w_out, s] = P[w_out + dx, s]
    A = jnp.asarray(np.stack([P[dx:dx + W] for dx in range(3)], axis=0))
    M = jnp.einsum('dws,kdio->ksiwo', A, w_khkwio.astype(jnp.float32))
    return M.reshape(3, W * Ci, W * Co)


def _block_diag(mat, reps):
    """kron(eye(reps), mat); supports a leading stacking dim."""
    eye = jnp.eye(reps, dtype=jnp.float32)
    if mat.ndim == 2:
        r, c = mat.shape
        return jnp.einsum('pq,ij->piqj', eye, mat).reshape(reps * r, reps * c)
    d, r, c = mat.shape
    return jnp.einsum('pq,dij->dpiqj', eye, mat).reshape(d, reps * r, reps * c)


def _build_params(C, W, P_lane, w1, w2, wm1, bm1, wm2, bm2, compute_dtype):
    WC = W * C
    L = P_lane * WC
    PW = P_lane * W
    m1 = _block_diag(_build_conv3x3_mats(w1, W), P_lane)            # (3, L, L)
    m2 = _block_diag(_build_conv3x3_mats(w2, W), P_lane)            # (3, L, L)
    wm1_big = _block_diag(wm1.astype(jnp.float32), PW)              # (L, L)
    wm2m = _block_diag(wm2.astype(jnp.float32), PW)                 # (L, PW)
    wm2_rep = jnp.broadcast_to(wm2.astype(jnp.float32), (C, C))     # replicated cols
    wm2e = _block_diag(wm2_rep, PW)                                 # (L, L)
    b1 = jnp.tile(bm1.astype(jnp.float32), PW).reshape(1, L)
    b2e = jnp.full((1, L), bm2[0], jnp.float32)
    b2m = jnp.full((1, PW), bm2[0], jnp.float32)
    cast = lambda a: a.astype(compute_dtype)
    return cast(m1), cast(m2), cast(wm1_big), b1, cast(wm2e), b2e, cast(wm2m), b2m


def _divisor_tile(count, unit, target, cap):
    """Smallest divisor d of count with d*unit >= target (capped at cap)."""
    best = 1
    for d in range(1, count + 1):
        if count % d:
            continue
        if d * unit > cap:
            break
        best = d
        if d * unit >= target:
            break
    return best


# -----------------------------------------------------------------------------
# Wrapper: NCHW in / NCHW out, PyTorch OIHW weights (matches the nn.Module).
# -----------------------------------------------------------------------------
def seperation_module_b(x_nchw, w1_oihw, w2_oihw, wm1_oihw, bm1, wm2_oihw, bm2,
                        compute_dtype=jnp.float32):
    N, C, H, W = x_nchw.shape
    assert H >= 2 and W >= 2, "reflection padding needs spatial dims >= 2"
    WC = W * C

    # PyTorch OIHW -> (kh, kw, cin, cout) / (cin, cout)
    w1 = jnp.transpose(w1_oihw, (2, 3, 1, 0))
    w2 = jnp.transpose(w2_oihw, (2, 3, 1, 0))
    wm1 = jnp.transpose(wm1_oihw[:, :, 0, 0], (1, 0))
    wm2 = jnp.transpose(wm2_oihw[:, :, 0, 0], (1, 0))

    # Lane packing (>=128 lanes) and row batching (>=128 MXU rows per step).
    P_lane = _divisor_tile(N, WC, target=128, cap=512)
    G = N // P_lane
    L = P_lane * WC
    PW = P_lane * W
    B_row = _divisor_tile(G, H, target=128, cap=512)
    grid = (G // B_row,)

    m1, m2, wm1b, b1, wm2e, b2e, wm2m, b2m = _build_params(
        C, W, P_lane, w1, w2, wm1, bm1, wm2, bm2, compute_dtype)

    # NCHW -> lane-packed (G, H, P_lane*W*C), channels fastest in lanes.
    # TODO(synk): in an NHWC end-to-end model these wrapper transposes disappear.
    x_nhwc = jnp.transpose(x_nchw, (0, 2, 3, 1))
    x_packed = (x_nhwc.reshape(G, P_lane, H, W, C)
                .transpose(0, 2, 1, 3, 4)
                .reshape(G, H, L))

    def const_spec(arr):
        nd = arr.ndim
        return pl.BlockSpec(arr.shape, lambda g, _nd=nd: (0,) * _nd)

    out_packed, mask_packed = pl.pallas_call(
        _sep_b_kernel,
        out_shape=(jax.ShapeDtypeStruct((G, H, L), x_packed.dtype),
                   jax.ShapeDtypeStruct((G, H, PW), x_packed.dtype)),
        grid_spec=pltpu.PrefetchScalarGridSpec(
            num_scalar_prefetch=0,
            grid=grid,
            in_specs=[pl.BlockSpec((B_row, H, L), lambda g: (g, 0, 0)),
                      const_spec(m1), const_spec(m2),
                      const_spec(wm1b), const_spec(b1),
                      const_spec(wm2e), const_spec(b2e),
                      const_spec(wm2m), const_spec(b2m)],
            out_specs=[pl.BlockSpec((B_row, H, L), lambda g: (g, 0, 0)),
                       pl.BlockSpec((B_row, H, PW), lambda g: (g, 0, 0))]),
        compiler_params=pltpu.CompilerParams(
            dimension_semantics=("parallel",)),
    )(x_packed, m1, m2, wm1b, b1, wm2e, b2e, wm2m, b2m)

    # Unpack back to NCHW / (N, 1, H, W).
    out_nchw = (out_packed.reshape(G, H, P_lane, W, C)
                .transpose(0, 2, 1, 3, 4)
                .reshape(N, H, W, C)
                .transpose(0, 3, 1, 2))
    mask_nchw = (mask_packed.reshape(G, H, P_lane, W)
                 .transpose(0, 2, 1, 3)
                 .reshape(N, H, W)[:, None, :, :])
    return out_nchw, mask_nchw


# -----------------------------------------------------------------------------
# Pure-JAX reference (NHWC), mirrors the PyTorch semantics exactly.
# -----------------------------------------------------------------------------
def _reference(x_nchw, w1_oihw, w2_oihw, wm1_oihw, bm1, wm2_oihw, bm2):
    x = jnp.transpose(x_nchw, (0, 2, 3, 1)).astype(jnp.float32)   # NHWC
    w1 = jnp.transpose(w1_oihw, (2, 3, 1, 0))
    w2 = jnp.transpose(w2_oihw, (2, 3, 1, 0))
    wm1 = jnp.transpose(wm1_oihw[:, :, 0, 0], (1, 0))
    wm2 = jnp.transpose(wm2_oihw[:, :, 0, 0], (1, 0))

    def rpad(t):
        return jnp.pad(t, ((0, 0), (1, 1), (1, 1), (0, 0)), mode='reflect')

    def conv3x3_relu(t, w):
        tp = rpad(t)
        H, W = t.shape[1], t.shape[2]
        acc = jnp.zeros(t.shape[:3] + (w.shape[-1],), jnp.float32)
        for dy in range(3):
            for dx in range(3):
                acc = acc + jnp.einsum('nhwi,io->nhwo',
                                       tp[:, dy:dy + H, dx:dx + W, :], w[dy, dx])
        return jnp.maximum(acc, 0.0)

    feat = conv3x3_relu(conv3x3_relu(x, w1), w2)
    h = jnp.tanh(jnp.einsum('nhwi,io->nhwo', feat, wm1) + bm1)
    m = jax.nn.sigmoid(jnp.einsum('nhwi,io->nhwo', h, wm2) + bm2)
    out = m * feat + x
    return (jnp.transpose(out, (0, 3, 1, 2)),
            jnp.transpose(m, (0, 3, 1, 2)))


if __name__ == "__main__":
    N, C, H, W = 2, 4, 16, 16          # in_c = out_c = 4
    key = jax.random.PRNGKey(0)
    kx, k1, k2, k3, k4, k5, k6 = jax.random.split(key, 7)

    x = jax.random.normal(kx, (N, C, H, W), jnp.float32)
    # PyTorch Conv2d weight layout: (out_c, in_c, kh, kw).
    w1 = jax.random.normal(k1, (C, C, 3, 3), jnp.float32) * 0.2   # conv1 layer 1
    w2 = jax.random.normal(k2, (C, C, 3, 3), jnp.float32) * 0.2   # conv1 layer 2
    wm1 = jax.random.normal(k3, (C, C, 1, 1), jnp.float32) * 0.3  # mask 1x1 #1
    bm1 = jax.random.normal(k4, (C,), jnp.float32) * 0.1
    wm2 = jax.random.normal(k5, (1, C, 1, 1), jnp.float32) * 0.3  # mask 1x1 #2
    bm2 = jax.random.normal(k6, (1,), jnp.float32) * 0.1

    ref_out, ref_mask = _reference(x, w1, w2, wm1, bm1, wm2, bm2)

    # f32 path (verified to tight tolerance).
    out_B, mask1 = seperation_module_b(x, w1, w2, wm1, bm1, wm2, bm2)
    jax.block_until_ready(out_B)
    jax.block_until_ready(mask1)
    np.testing.assert_allclose(np.asarray(out_B), np.asarray(ref_out),
                               rtol=1e-3, atol=1e-3)
    np.testing.assert_allclose(np.asarray(mask1), np.asarray(ref_mask),
                               rtol=1e-3, atol=1e-3)

    # bf16 MXU path (recommended on v6e/v7x): bf16 operands, f32 accumulation.
    out_bf, mask_bf = seperation_module_b(x, w1, w2, wm1, bm1, wm2, bm2,
                                          compute_dtype=jnp.bfloat16)
    jax.block_until_ready(out_bf)
    jax.block_until_ready(mask_bf)
    np.testing.assert_allclose(np.asarray(out_bf), np.asarray(ref_out),
                               rtol=1e-1, atol=1e-1)
    np.testing.assert_allclose(np.asarray(mask_bf), np.asarray(ref_mask),
                               rtol=1e-1, atol=1e-1)

    print("KERNEL_OK")
</pallas_src>

<mosaic_0001>
module attributes {stable_mosaic.version = 11 : i64} {
  func.func @_sep_b_kernel(%arg0: i32, %arg1: memref<1x16x128xf32, #tpu.memory_space<vmem>>, %arg2: memref<3x128x128xf32, #tpu.memory_space<vmem>>, %arg3: memref<3x128x128xf32, #tpu.memory_space<vmem>>, %arg4: memref<128x128xf32, #tpu.memory_space<vmem>>, %arg5: memref<1x128xf32, #tpu.memory_space<vmem>>, %arg6: memref<128x128xf32, #tpu.memory_space<vmem>>, %arg7: memref<1x128xf32, #tpu.memory_space<vmem>>, %arg8: memref<128x32xf32, #tpu.memory_space<vmem>>, %arg9: memref<1x32xf32, #tpu.memory_space<vmem>>, %arg10: memref<1x16x128xf32, #tpu.memory_space<vmem>>, %arg11: memref<1x16x32xf32, #tpu.memory_space<vmem>>) attributes {dimension_semantics = [#tpu.dimension_semantics<parallel>], iteration_bounds = array<i64: 1>, scalar_prefetch = 0 : i64, scratch_operands = 0 : i64, tpu.core_type = #tpu.core_type<tc>, window_params = [{transform_indices = @transform_0, window_bounds = array<i64: 1, 16, 128>}, {pipeline_mode = #tpu.pipeline_mode<synchronous>, transform_indices = @transform_1, window_bounds = array<i64: 3, 128, 128>}, {pipeline_mode = #tpu.pipeline_mode<synchronous>, transform_indices = @transform_2, window_bounds = array<i64: 3, 128, 128>}, {pipeline_mode = #tpu.pipeline_mode<synchronous>, transform_indices = @transform_3, window_bounds = array<i64: 128, 128>}, {pipeline_mode = #tpu.pipeline_mode<synchronous>, transform_indices = @transform_4, window_bounds = array<i64: 1, 128>}, {pipeline_mode = #tpu.pipeline_mode<synchronous>, transform_indices = @transform_5, window_bounds = array<i64: 128, 128>}, {pipeline_mode = #tpu.pipeline_mode<synchronous>, transform_indices = @transform_6, window_bounds = array<i64: 1, 128>}, {pipeline_mode = #tpu.pipeline_mode<synchronous>, transform_indices = @transform_7, window_bounds = array<i64: 128, 32>}, {pipeline_mode = #tpu.pipeline_mode<synchronous>, transform_indices = @transform_8, window_bounds = array<i64: 1, 32>}, {transform_indices = @transform_9, window_bounds = array<i64: 1, 16, 128>}, {transform_indices = @transform_10, window_bounds = array<i64: 1, 16, 32>}]} {
    %c0 = arith.constant 0 : index
    %c0_0 = arith.constant 0 : index
    %c0_1 = arith.constant 0 : index
    %0 = vector.load %arg1[%c0, %c0_0, %c0_1] : memref<1x16x128xf32, #tpu.memory_space<vmem>>, vector<1x16x128xf32>
    %1 = vector.shape_cast %0 : vector<1x16x128xf32> to vector<16x128xf32>
    %c0_2 = arith.constant 0 : index
    %c0_3 = arith.constant 0 : index
    %c0_4 = arith.constant 0 : index
    %2 = vector.load %arg2[%c0_2, %c0_3, %c0_4] : memref<3x128x128xf32, #tpu.memory_space<vmem>>, vector<1x128x128xf32>
    %3 = vector.shape_cast %2 : vector<1x128x128xf32> to vector<128x128xf32>
    %cst = arith.constant dense<0.000000e+00> : vector<16x128xf32>
    %4 = tpu.matmul %1, %3, %cst {dimension_numbers = #tpu.dot_dimension_numbers<[1], [0], [0], [1], [0, 0, 1, 1], [], []>} : vector<16x128xf32>, vector<128x128xf32>, vector<16x128xf32> -> vector<16x128xf32>
    %5 = vector.shape_cast %4 : vector<16x128xf32> to vector<1x16x128xf32>
    %c1 = arith.constant 1 : index
    %c0_5 = arith.constant 0 : index
    %c0_6 = arith.constant 0 : index
    %6 = vector.load %arg2[%c1, %c0_5, %c0_6] : memref<3x128x128xf32, #tpu.memory_space<vmem>>, vector<1x128x128xf32>
    %7 = vector.shape_cast %6 : vector<1x128x128xf32> to vector<128x128xf32>
    %cst_7 = arith.constant dense<0.000000e+00> : vector<16x128xf32>
    %8 = tpu.matmul %1, %7, %cst_7 {dimension_numbers = #tpu.dot_dimension_numbers<[1], [0], [0], [1], [0, 0, 1, 1], [], []>} : vector<16x128xf32>, vector<128x128xf32>, vector<16x128xf32> -> vector<16x128xf32>
    %9 = vector.shape_cast %8 : vector<16x128xf32> to vector<1x16x128xf32>
    %c2 = arith.constant 2 : index
    %c0_8 = arith.constant 0 : index
    %c0_9 = arith.constant 0 : index
    %10 = vector.load %arg2[%c2, %c0_8, %c0_9] : memref<3x128x128xf32, #tpu.memory_space<vmem>>, vector<1x128x128xf32>
    %11 = vector.shape_cast %10 : vector<1x128x128xf32> to vector<128x128xf32>
    %cst_10 = arith.constant dense<0.000000e+00> : vector<16x128xf32>
    %12 = tpu.matmul %1, %11, %cst_10 {dimension_numbers = #tpu.dot_dimension_numbers<[1], [0], [0], [1], [0, 0, 1, 1], [], []>} : vector<16x128xf32>, vector<128x128xf32>, vector<16x128xf32> -> vector<16x128xf32>
    %13 = vector.shape_cast %12 : vector<16x128xf32> to vector<1x16x128xf32>
    %14 = vector.extract_strided_slice %5 {offsets = [0, 1, 0], sizes = [1, 1, 128], strides = [1, 1, 1]} : vector<1x16x128xf32> to vector<1x1x128xf32>
    %15 = vector.extract_strided_slice %5 {offsets = [0, 0, 0], sizes = [1, 15, 128], strides = [1, 1, 1]} : vector<1x16x128xf32> to vector<1x15x128xf32>
    %16 = tpu.concatenate %14, %15 in 1 : vector<1x1x128xf32>, vector<1x15x128xf32> -> vector<1x16x128xf32>
    %17 = vector.extract_strided_slice %13 {offsets = [0, 1, 0], sizes = [1, 15, 128], strides = [1, 1, 1]} : vector<1x16x128xf32> to vector<1x15x128xf32>
    %18 = vector.extract_strided_slice %13 {offsets = [0, 14, 0], sizes = [1, 1, 128], strides = [1, 1, 1]} : vector<1x16x128xf32> to vector<1x1x128xf32>
    %19 = tpu.concatenate %17, %18 in 1 : vector<1x15x128xf32>, vector<1x1x128xf32> -> vector<1x16x128xf32>
    %20 = arith.addf %16, %9 : vector<1x16x128xf32>
    %21 = arith.addf %20, %19 : vector<1x16x128xf32>
    %cst_11 = arith.constant 0.000000e+00 : f32
    %22 = vector.broadcast %cst_11 : f32 to vector<1x16x128xf32>
    %23 = arith.maximumf %21, %22 : vector<1x16x128xf32>
    %24 = vector.shape_cast %23 : vector<1x16x128xf32> to vector<16x128xf32>
    %c0_12 = arith.constant 0 : index
    %c0_13 = arith.constant 0 : index
    %c0_14 = arith.constant 0 : index
    %25 = vector.load %arg3[%c0_12, %c0_13, %c0_14] : memref<3x128x128xf32, #tpu.memory_space<vmem>>, vector<1x128x128xf32>
    %26 = vector.shape_cast %25 : vector<1x128x128xf32> to vector<128x128xf32>
    %cst_15 = arith.constant dense<0.000000e+00> : vector<16x128xf32>
    %27 = tpu.matmul %24, %26, %cst_15 {dimension_numbers = #tpu.dot_dimension_numbers<[1], [0], [0], [1], [0, 0, 1, 1], [], []>} : vector<16x128xf32>, vector<128x128xf32>, vector<16x128xf32> -> vector<16x128xf32>
    %28 = vector.shape_cast %27 : vector<16x128xf32> to vector<1x16x128xf32>
    %c1_16 = arith.constant 1 : index
    %c0_17 = arith.constant 0 : index
    %c0_18 = arith.constant 0 : index
    %29 = vector.load %arg3[%c1_16, %c0_17, %c0_18] : memref<3x128x128xf32, #tpu.memory_space<vmem>>, vector<1x128x128xf32>
    %30 = vector.shape_cast %29 : vector<1x128x128xf32> to vector<128x128xf32>
    %cst_19 = arith.constant dense<0.000000e+00> : vector<16x128xf32>
    %31 = tpu.matmul %24, %30, %cst_19 {dimension_numbers = #tpu.dot_dimension_numbers<[1], [0], [0], [1], [0, 0, 1, 1], [], []>} : vector<16x128xf32>, vector<128x128xf32>, vector<16x128xf32> -> vector<16x128xf32>
    %32 = vector.shape_cast %31 : vector<16x128xf32> to vector<1x16x128xf32>
    %c2_20 = arith.constant 2 : index
    %c0_21 = arith.constant 0 : index
    %c0_22 = arith.constant 0 : index
    %33 = vector.load %arg3[%c2_20, %c0_21, %c0_22] : memref<3x128x128xf32, #tpu.memory_space<vmem>>, vector<1x128x128xf32>
    %34 = vector.shape_cast %33 : vector<1x128x128xf32> to vector<128x128xf32>
    %cst_23 = arith.constant dense<0.000000e+00> : vector<16x128xf32>
    %35 = tpu.matmul %24, %34, %cst_23 {dimension_numbers = #tpu.dot_dimension_numbers<[1], [0], [0], [1], [0, 0, 1, 1], [], []>} : vector<16x128xf32>, vector<128x128xf32>, vector<16x128xf32> -> vector<16x128xf32>
    %36 = vector.shape_cast %35 : vector<16x128xf32> to vector<1x16x128xf32>
    %37 = vector.extract_strided_slice %28 {offsets = [0, 1, 0], sizes = [1, 1, 128], strides = [1, 1, 1]} : vector<1x16x128xf32> to vector<1x1x128xf32>
    %38 = vector.extract_strided_slice %28 {offsets = [0, 0, 0], sizes = [1, 15, 128], strides = [1, 1, 1]} : vector<1x16x128xf32> to vector<1x15x128xf32>
    %39 = tpu.concatenate %37, %38 in 1 : vector<1x1x128xf32>, vector<1x15x128xf32> -> vector<1x16x128xf32>
    %40 = vector.extract_strided_slice %36 {offsets = [0, 1, 0], sizes = [1, 15, 128], strides = [1, 1, 1]} : vector<1x16x128xf32> to vector<1x15x128xf32>
    %41 = vector.extract_strided_slice %36 {offsets = [0, 14, 0], sizes = [1, 1, 128], strides = [1, 1, 1]} : vector<1x16x128xf32> to vector<1x1x128xf32>
    %42 = tpu.concatenate %40, %41 in 1 : vector<1x15x128xf32>, vector<1x1x128xf32> -> vector<1x16x128xf32>
    %43 = arith.addf %39, %32 : vector<1x16x128xf32>
    %44 = arith.addf %43, %42 : vector<1x16x128xf32>
    %cst_24 = arith.constant 0.000000e+00 : f32
    %45 = vector.broadcast %cst_24 : f32 to vector<1x16x128xf32>
    %46 = arith.maximumf %44, %45 : vector<1x16x128xf32>
    %47 = vector.shape_cast %46 : vector<1x16x128xf32> to vector<16x128xf32>
    %c0_25 = arith.constant 0 : index
    %c0_26 = arith.constant 0 : index
    %48 = vector.load %arg4[%c0_25, %c0_26] : memref<128x128xf32, #tpu.memory_space<vmem>>, vector<128x128xf32>
    %cst_27 = arith.constant dense<0.000000e+00> : vector<16x128xf32>
    %49 = tpu.matmul %47, %48, %cst_27 {dimension_numbers = #tpu.dot_dimension_numbers<[1], [0], [0], [1], [0, 0, 1, 1], [], []>} : vector<16x128xf32>, vector<128x128xf32>, vector<16x128xf32> -> vector<16x128xf32>
    %c0_28 = arith.constant 0 : index
    %c0_29 = arith.constant 0 : index
    %50 = vector.load %arg5[%c0_28, %c0_29] : memref<1x128xf32, #tpu.memory_space<vmem>>, vector<1x128xf32>
    %51 = vector.broadcast %50 : vector<1x128xf32> to vector<16x128xf32>
    %52 = arith.addf %49, %51 : vector<16x128xf32>
    %53 = math.tanh %52 : vector<16x128xf32>
    %c0_30 = arith.constant 0 : index
    %c0_31 = arith.constant 0 : index
    %54 = vector.load %arg6[%c0_30, %c0_31] : memref<128x128xf32, #tpu.memory_space<vmem>>, vector<128x128xf32>
    %cst_32 = arith.constant dense<0.000000e+00> : vector<16x128xf32>
    %55 = tpu.matmul %53, %54, %cst_32 {dimension_numbers = #tpu.dot_dimension_numbers<[1], [0], [0], [1], [0, 0, 1, 1], [], []>} : vector<16x128xf32>, vector<128x128xf32>, vector<16x128xf32> -> vector<16x128xf32>
    %c0_33 = arith.constant 0 : index
    %c0_34 = arith.constant 0 : index
    %56 = vector.load %arg7[%c0_33, %c0_34] : memref<1x128xf32, #tpu.memory_space<vmem>>, vector<1x128xf32>
    %57 = vector.broadcast %56 : vector<1x128xf32> to vector<16x128xf32>
    %58 = arith.addf %55, %57 : vector<16x128xf32>
    %59 = arith.negf %58 : vector<16x128xf32>
    %60 = math.exp %59 : vector<16x128xf32>
    %cst_35 = arith.constant 1.000000e+00 : f32
    %61 = vector.broadcast %cst_35 : f32 to vector<16x128xf32>
    %62 = arith.addf %61, %60 : vector<16x128xf32>
    %63 = arith.divf %61, %62 : vector<16x128xf32>
    %c0_36 = arith.constant 0 : index
    %c0_37 = arith.constant 0 : index
    %64 = vector.load %arg8[%c0_36, %c0_37] : memref<128x32xf32, #tpu.memory_space<vmem>>, vector<128x32xf32>
    %cst_38 = arith.constant dense<0.000000e+00> : vector<16x32xf32>
    %65 = tpu.matmul %53, %64, %cst_38 {dimension_numbers = #tpu.dot_dimension_numbers<[1], [0], [0], [1], [0, 0, 1, 1], [], []>} : vector<16x128xf32>, vector<128x32xf32>, vector<16x32xf32> -> vector<16x32xf32>
    %c0_39 = arith.constant 0 : index
    %c0_40 = arith.constant 0 : index
    %66 = vector.load %arg9[%c0_39, %c0_40] : memref<1x32xf32, #tpu.memory_space<vmem>>, vector<1x32xf32>
    %67 = vector.broadcast %66 : vector<1x32xf32> to vector<16x32xf32>
    %68 = arith.addf %65, %67 : vector<16x32xf32>
    %69 = arith.negf %68 : vector<16x32xf32>
    %70 = math.exp %69 : vector<16x32xf32>
    %cst_41 = arith.constant 1.000000e+00 : f32
    %71 = vector.broadcast %cst_41 : f32 to vector<16x32xf32>
    %72 = arith.addf %71, %70 : vector<16x32xf32>
    %73 = arith.divf %71, %72 : vector<16x32xf32>
    %74 = arith.mulf %63, %47 : vector<16x128xf32>
    %75 = arith.addf %74, %1 : vector<16x128xf32>
    %76 = vector.shape_cast %75 : vector<16x128xf32> to vector<1x16x128xf32>
    %c0_42 = arith.constant 0 : index
    %c0_43 = arith.constant 0 : index
    %c0_44 = arith.constant 0 : index
    %77 = vector.load %arg10[%c0_42, %c0_43, %c0_44] : memref<1x16x128xf32, #tpu.memory_space<vmem>>, vector<1x16x128xf32>
    tpu.vector_store %arg10[%c0_42, %c0_43, %c0_44], %76 {strides = array<i32>} : memref<1x16x128xf32, #tpu.memory_space<vmem>>, vector<1x16x128xf32>,
    %78 = vector.shape_cast %73 : vector<16x32xf32> to vector<1x16x32xf32>
    %c0_45 = arith.constant 0 : index
    %c0_46 = arith.constant 0 : index
    %c0_47 = arith.constant 0 : index
    %79 = vector.load %arg11[%c0_45, %c0_46, %c0_47] : memref<1x16x32xf32, #tpu.memory_space<vmem>>, vector<1x16x32xf32>
    tpu.vector_store %arg11[%c0_45, %c0_46, %c0_47], %78 {strides = array<i32>} : memref<1x16x32xf32, #tpu.memory_space<vmem>>, vector<1x16x32xf32>,
    return
  }
  func.func @transform_0(%arg0: i32) -> (i32, i32, i32) {
    %c0_i32 = arith.constant 0 : i32
    %c0_i32_0 = arith.constant 0 : i32
    %c0_i32_1 = arith.constant 0 : i32
    return %arg0, %c0_i32, %c0_i32_0 : i32, i32, i32
  }
  func.func @transform_1(%arg0: i32) -> (i32, i32, i32) {
    %c0_i32 = arith.constant 0 : i32
    %c0_i32_0 = arith.constant 0 : i32
    %c0_i32_1 = arith.constant 0 : i32
    %c0_i32_2 = arith.constant 0 : i32
    return %c0_i32, %c0_i32_0, %c0_i32_1 : i32, i32, i32
  }
  func.func @transform_2(%arg0: i32) -> (i32, i32, i32) {
    %c0_i32 = arith.constant 0 : i32
    %c0_i32_0 = arith.constant 0 : i32
    %c0_i32_1 = arith.constant 0 : i32
    %c0_i32_2 = arith.constant 0 : i32
    return %c0_i32, %c0_i32_0, %c0_i32_1 : i32, i32, i32
  }
  func.func @transform_3(%arg0: i32) -> (i32, i32) {
    %c0_i32 = arith.constant 0 : i32
    %c0_i32_0 = arith.constant 0 : i32
    %c0_i32_1 = arith.constant 0 : i32
    return %c0_i32, %c0_i32_0 : i32, i32
  }
  func.func @transform_4(%arg0: i32) -> (i32, i32) {
    %c0_i32 = arith.constant 0 : i32
    %c0_i32_0 = arith.constant 0 : i32
    %c0_i32_1 = arith.constant 0 : i32
    return %c0_i32, %c0_i32_0 : i32, i32
  }
  func.func @transform_5(%arg0: i32) -> (i32, i32) {
    %c0_i32 = arith.constant 0 : i32
    %c0_i32_0 = arith.constant 0 : i32
    %c0_i32_1 = arith.constant 0 : i32
    return %c0_i32, %c0_i32_0 : i32, i32
  }
  func.func @transform_6(%arg0: i32) -> (i32, i32) {
    %c0_i32 = arith.constant 0 : i32
    %c0_i32_0 = arith.constant 0 : i32
    %c0_i32_1 = arith.constant 0 : i32
    return %c0_i32, %c0_i32_0 : i32, i32
  }
  func.func @transform_7(%arg0: i32) -> (i32, i32) {
    %c0_i32 = arith.constant 0 : i32
    %c0_i32_0 = arith.constant 0 : i32
    %c0_i32_1 = arith.constant 0 : i32
    return %c0_i32, %c0_i32_0 : i32, i32
  }
  func.func @transform_8(%arg0: i32) -> (i32, i32) {
    %c0_i32 = arith.constant 0 : i32
    %c0_i32_0 = arith.constant 0 : i32
    %c0_i32_1 = arith.constant 0 : i32
    return %c0_i32, %c0_i32_0 : i32, i32
  }
  func.func @transform_9(%arg0: i32) -> (i32, i32, i32) {
    %c0_i32 = arith.constant 0 : i32
    %c0_i32_0 = arith.constant 0 : i32
    %c0_i32_1 = arith.constant 0 : i32
    return %arg0, %c0_i32, %c0_i32_0 : i32, i32, i32
  }
  func.func @transform_10(%arg0: i32) -> (i32, i32, i32) {
    %c0_i32 = arith.constant 0 : i32
    %c0_i32_0 = arith.constant 0 : i32
    %c0_i32_1 = arith.constant 0 : i32
    return %arg0, %c0_i32, %c0_i32_0 : i32, i32, i32
  }
}

</mosaic_0001>

<llo_original>
// kernel: tpu_custom_call.1
$region0: #{tpu_custom_call.1}
  #allocation0 [shape = 'u32[]', space=smem, size = 0x4, offset = 0x4, fixed_abs, tag = 'smem constant byte address 0x4 - core index']
  #allocation1 [shape = 'u32[144,128]{1,0:T(1,128)}', space=vmem, size = 0x12000, scoped, tag = 'internal scratch']
  %s0 = inlined_call_operand.vmem [shape: f32[1,16,128], index: 0, kind: input, shape index: {}]
  %s1 = inlined_call_operand.hbm [shape: f32[3,128,128], index: 1, kind: input, shape index: {}]
  %s2 = inlined_call_operand.hbm [shape: f32[3,128,128], index: 2, kind: input, shape index: {}]
  %s3 = inlined_call_operand.vmem [shape: f32[128,128], index: 3, kind: input, shape index: {}]
  %s4 = inlined_call_operand.vmem [shape: f32[1,128], index: 4, kind: input, shape index: {}]
  %s5 = inlined_call_operand.hbm [shape: f32[128,128], index: 5, kind: input, shape index: {}]
  %s6 = inlined_call_operand.vmem [shape: f32[1,128], index: 6, kind: input, shape index: {}]
  %s7 = inlined_call_operand.vmem [shape: f32[128,32], index: 7, kind: input, shape index: {}]
  %s8 = inlined_call_operand.vmem [shape: f32[1,32], index: 8, kind: input, shape index: {}]
  %s9 = inlined_call_operand.hbm [shape: f32[1,16,128], index: 9, kind: output, shape index: {0}]
  %s10 = inlined_call_operand.hbm [shape: f32[1,16,32], index: 10, kind: output, shape index: {1}]
  %11 = xla_tuple %s9, %s10
  %s12 = sld [smem:[#allocation0]]
  $region66: #{tpu_custom_call.1} parent=0
    _
  %s14 = ssub.s32 1, %s12
  %s15 = scalar_select 0, %s14, %s12
  $region1: #{tpu_custom_call.1} parent=0
    #allocation2 [shape = 'u8[196608]{0}', space=vmem, size = 0x30000, scoped, tag = 'input window, operand 1, single buffered']
    #allocation3 [shape = 's32[1]{0}', space=sflag, size = 0x4, scoped, tag = 'scoped memory for tpu_custom_call.1']
    #allocation4 [shape = 's32[1]{0}', space=sflag, size = 0x4, scoped, tag = 'scoped memory for tpu_custom_call.1']
    #allocation5 [shape = 'u8[196608]{0}', space=vmem, size = 0x30000, scoped, tag = 'input window, operand 2, single buffered']
    #allocation6 [shape = 's32[1]{0}', space=sflag, size = 0x4, scoped, tag = 'scoped memory for tpu_custom_call.1']
    #allocation7 [shape = 'u8[65536]{0}', space=vmem, size = 0x10000, scoped, tag = 'input window, operand 5, single buffered']
    #allocation8 [shape = 'u8[8192]{0}', space=vmem, size = 0x2000, scoped, tag = 'output window, operand 0, single buffered']
    #allocation9 [shape = 'u8[8192]{0}', space=vmem, size = 0x2000, scoped, tag = 'output window, operand 1, single buffered']
    #allocation10 [shape = 's32[1]{0}', space=sflag, size = 0x4, scoped, tag = 'scoped memory for tpu_custom_call.1']
    %16 = vsyncpa [#allocation3], 0
    %17 = vsyncpa [#allocation6], 0
    %18 = vsyncpa [#allocation4], 0
    %19 = vsyncpa [#allocation10], 0
    // Predicated region
    $region2: #{tpu_custom_call.1} parent=1 // pred_check
      _
    $region3: #{tpu_custom_call.1} parent=1 // pred_check_branch
      %21 = sbr.rel (0) target = $region5
    $region4: #{tpu_custom_call.1} parent=1 // pred_region
      _
    $region5: #{tpu_custom_call.1} parent=1 // pred_fallthru
      _
    // Predicated region
    $region6: #{tpu_custom_call.1} parent=1 // pred_check
      _
    $region7: #{tpu_custom_call.1} parent=1 // pred_check_branch
      %23 = sbr.rel (0) target = $region9
    $region8: #{tpu_custom_call.1} parent=1 // pred_region
      %s25 = ssub.s32 6144, 6144
      %26 = vsyncadd [#allocation3], %s25
      %s27 = sshll.u32 [#allocation2], 4
      %s28 = int_to_ptr.vmem [resolvable:$true] %s27
      %33 = dma.hbm_to_vmem [thread:$0]  %s1, 6144, %s28, [#allocation3], 128, 128, 8
    $region9: #{tpu_custom_call.1} parent=1 // pred_fallthru
      _
    // Predicated region
    $region10: #{tpu_custom_call.1} parent=1 // pred_check
      _
    $region11: #{tpu_custom_call.1} parent=1 // pred_check_branch
      %35 = sbr.rel (0) target = $region13
    $region12: #{tpu_custom_call.1} parent=1 // pred_region
      %s37 = ssub.s32 6144, 6144
      %38 = vsyncadd [#allocation6], %s37
      %s39 = sshll.u32 [#allocation5], 4
      %s40 = int_to_ptr.vmem [resolvable:$true] %s39
      %45 = dma.hbm_to_vmem [thread:$0]  %s2, 6144, %s40, [#allocation6], 128, 128, 8
    $region13: #{tpu_custom_call.1} parent=1 // pred_fallthru
      _
    // Predicated region
    $region14: #{tpu_custom_call.1} parent=1 // pred_check
      _
    $region15: #{tpu_custom_call.1} parent=1 // pred_check_branch
      %47 = sbr.rel (0) target = $region17
    $region16: #{tpu_custom_call.1} parent=1 // pred_region
      _
    $region17: #{tpu_custom_call.1} parent=1 // pred_fallthru
      _
    // Predicated region
    $region18: #{tpu_custom_call.1} parent=1 // pred_check
      _
    $region19: #{tpu_custom_call.1} parent=1 // pred_check_branch
      %49 = sbr.rel (0) target = $region21
    $region20: #{tpu_custom_call.1} parent=1 // pred_region
      _
    $region21: #{tpu_custom_call.1} parent=1 // pred_fallthru
      _
    // Predicated region
    $region22: #{tpu_custom_call.1} parent=1 // pred_check
      _
    $region23: #{tpu_custom_call.1} parent=1 // pred_check_branch
      %51 = sbr.rel (0) target = $region25
    $region24: #{tpu_custom_call.1} parent=1 // pred_region
      %s53 = ssub.s32 2048, 2048
      %54 = vsyncadd [#allocation6], %s53
      %s55 = sshll.u32 [#allocation7], 4
      %s56 = int_to_ptr.vmem [resolvable:$true] %s55
      %61 = dma.hbm_to_vmem [thread:$0]  %s5, 2048, %s56, [#allocation6], 128, 128, 8
    $region25: #{tpu_custom_call.1} parent=1 // pred_fallthru
      _
    // Predicated region
    $region26: #{tpu_custom_call.1} parent=1 // pred_check
      _
    $region27: #{tpu_custom_call.1} parent=1 // pred_check_branch
      %63 = sbr.rel (0) target = $region29
    $region28: #{tpu_custom_call.1} parent=1 // pred_region
      _
    $region29: #{tpu_custom_call.1} parent=1 // pred_fallthru
      _
    // Predicated region
    $region30: #{tpu_custom_call.1} parent=1 // pred_check
      _
    $region31: #{tpu_custom_call.1} parent=1 // pred_check_branch
      %65 = sbr.rel (0) target = $region33
    $region32: #{tpu_custom_call.1} parent=1 // pred_region
      _
    $region33: #{tpu_custom_call.1} parent=1 // pred_fallthru
      _
    // Predicated region
    $region34: #{tpu_custom_call.1} parent=1 // pred_check
      _
    $region35: #{tpu_custom_call.1} parent=1 // pred_check_branch
      %67 = sbr.rel (0) target = $region37
    $region36: #{tpu_custom_call.1} parent=1 // pred_region
      _
    $region37: #{tpu_custom_call.1} parent=1 // pred_fallthru
      _
    // Predicated region
    $region38: #{tpu_custom_call.1} parent=1 // pred_check
      _
    $region39: #{tpu_custom_call.1} parent=1 // pred_check_branch
      %69 = sbr.rel (0) target = $region41
    $region40: #{tpu_custom_call.1} parent=1 // pred_region
      %70 = dma.done [#allocation3], 6144
    $region41: #{tpu_custom_call.1} parent=1 // pred_fallthru
      _
    // Predicated region
    $region42: #{tpu_custom_call.1} parent=1 // pred_check
      _
    $region43: #{tpu_custom_call.1} parent=1 // pred_check_branch
      %72 = sbr.rel (0) target = $region45
    $region44: #{tpu_custom_call.1} parent=1 // pred_region
      %73 = dma.done [#allocation6], 6144
    $region45: #{tpu_custom_call.1} parent=1 // pred_fallthru
      _
    // Predicated region
    $region46: #{tpu_custom_call.1} parent=1 // pred_check
      _
    $region47: #{tpu_custom_call.1} parent=1 // pred_check_branch
      %75 = sbr.rel (0) target = $region49
    $region48: #{tpu_custom_call.1} parent=1 // pred_region
      %76 = dma.done [#allocation6], 2048
    $region49: #{tpu_custom_call.1} parent=1 // pred_fallthru
      _
    %v77 = vld [vmem:[%s0] sm:$0xff]
    %v78 = vld [vmem:[%s0 + $0x8] sm:$0xff]
    %v79 = vld [vmem:[#allocation2] sm:$0xff]
    %v80 = vld [vmem:[#allocation2 + $0x8] sm:$0xff]
    %v81 = vld [vmem:[#allocation2 + $0x10] sm:$0xff]
    %v82 = vld [vmem:[#allocation2 + $0x18] sm:$0xff]
    %v83 = vld [vmem:[#allocation2 + $0x20] sm:$0xff]
    %v84 = vld [vmem:[#allocation2 + $0x28] sm:$0xff]
    %v85 = vld [vmem:[#allocation2 + $0x30] sm:$0xff]
    %v86 = vld [vmem:[#allocation2 + $0x38] sm:$0xff]
    %v87 = vld [vmem:[#allocation2 + $0x40] sm:$0xff]
    %v88 = vld [vmem:[#allocation2 + $0x48] sm:$0xff]
    %v89 = vld [vmem:[#allocation2 + $0x50] sm:$0xff]
    %v90 = vld [vmem:[#allocation2 + $0x58] sm:$0xff]
    %v91 = vld [vmem:[#allocation2 + $0x60] sm:$0xff]
    %v92 = vld [vmem:[#allocation2 + $0x68] sm:$0xff]
    %v93 = vld [vmem:[#allocation2 + $0x70] sm:$0xff]
    %v94 = vld [vmem:[#allocation2 + $0x78] sm:$0xff]
    %95 = vmatprep.subr.mxu0 0.0
    %96 = vmatpush1.msra.mxu0 %v94
    %97 = vmatprep.subr.mxu0 0.0
    %98 = vmatpush1.msra.mxu0 %v93
    %99 = vmatprep.subr.mxu0 0.0
    %100 = vmatpush1.msra.mxu0 %v92
    %101 = vmatprep.subr.mxu0 0.0
    %102 = vmatpush1.msra.mxu0 %v91
    %103 = vmatprep.subr.mxu0 0.0
    %104 = vmatpush1.msra.mxu0 %v90
    %105 = vmatprep.subr.mxu0 0.0
    %106 = vmatpush1.msra.mxu0 %v89
    %107 = vmatprep.subr.mxu0 0.0
    %108 = vmatpush1.msra.mxu0 %v88
    %109 = vmatprep.subr.mxu0 0.0
    %110 = vmatpush1.msra.mxu0 %v87
    %111 = vmatprep.subr.mxu0 0.0
    %112 = vmatpush1.msra.mxu0 %v86
    %113 = vmatprep.subr.mxu0 0.0
    %114 = vmatpush1.msra.mxu0 %v85
    %115 = vmatprep.subr.mxu0 0.0
    %116 = vmatpush1.msra.mxu0 %v84
    %117 = vmatprep.subr.mxu0 0.0
    %118 = vmatpush1.msra.mxu0 %v83
    %119 = vmatprep.subr.mxu0 0.0
    %120 = vmatpush1.msra.mxu0 %v82
    %121 = vmatprep.subr.mxu0 0.0
    %122 = vmatpush1.msra.mxu0 %v81
    %123 = vmatprep.subr.mxu0 0.0
    %124 = vmatpush1.msra.mxu0 %v80
    %125 = vmatprep.subr.mxu0 0.0
    %126 = vmatpush1.msra.mxu0 %v79
    %127 = vmatprep.subr.mxu0 0.0
    %128 = vmatpush2.msra.mxu0 0.0
    %129 = vmatprep.subr.mxu0 0.0
    %130 = vmatpush2.msra.mxu0 0.0
    %131 = vmatprep.subr.mxu0 0.0
    %132 = vmatpush2.msra.mxu0 0.0
    %133 = vmatprep.subr.mxu0 0.0
    %134 = vmatpush2.msra.mxu0 0.0
    %135 = vmatprep.subr.mxu0 0.0
    %136 = vmatpush2.msra.mxu0 0.0
    %137 = vmatprep.subr.mxu0 0.0
    %138 = vmatpush2.msra.mxu0 0.0
    %139 = vmatprep.subr.mxu0 0.0
    %140 = vmatpush2.msra.mxu0 0.0
    %141 = vmatprep.subr.mxu0 0.0
    %142 = vmatpush2.msra.mxu0 0.0
    %143 = vmatprep.subr.mxu0 0.0
    %144 = vmatpush2.msra.mxu0 0.0
    %145 = vmatprep.subr.mxu0 0.0
    %146 = vmatpush2.msra.mxu0 0.0
    %147 = vmatprep.subr.mxu0 0.0
    %148 = vmatpush2.msra.mxu0 0.0
    %149 = vmatprep.subr.mxu0 0.0
    %150 = vmatpush2.msra.mxu0 0.0
    %151 = vmatprep.subr.mxu0 0.0
    %152 = vmatpush2.msra.mxu0 0.0
    %153 = vmatprep.subr.mxu0 0.0
    %154 = vmatpush2.msra.mxu0 0.0
    %155 = vmatprep.subr.mxu0 0.0
    %156 = vmatpush2.msra.mxu0 0.0
    %157 = vmatprep.subr.mxu0 0.0
    %158 = vmatpush2.msra.mxu0 0.0
    %159 = vmatprep.mubr.f32.mxu0 0.0
    %160 = vmatmul.mubr.f32.gmra.mxu0 %v77
    %v161 = vpop.f32.mrf.mxu0
    %v162 = vadd.f32 0.0, %v161
    %v163 = vpop.f32.mrf.mxu0
    %164 = vmatprep.mubr.f32.mxu0 0.0
    %165 = vmatmul.mubr.f32.gmra.mxu0 %v78
    %v166 = vpop.f32.mrf.mxu0
    %v167 = vadd.f32 0.0, %v166
    %v168 = vpop.f32.mrf.mxu0
    %169 = vdwg.mxu0
    %s170 = scalar_lea.vmem [#allocation2], 128
    %v171 = vld [vmem:[%s170] sm:$0xff]
    %v172 = vld [vmem:[%s170 + $0x8] sm:$0xff]
    %v173 = vld [vmem:[%s170 + $0x10] sm:$0xff]
    %v174 = vld [vmem:[%s170 + $0x18] sm:$0xff]
    %v175 = vld [vmem:[%s170 + $0x20] sm:$0xff]
    %v176 = vld [vmem:[%s170 + $0x28] sm:$0xff]
    %v177 = vld [vmem:[%s170 + $0x30] sm:$0xff]
    %v178 = vld [vmem:[%s170 + $0x38] sm:$0xff]
    %v179 = vld [vmem:[%s170 + $0x40] sm:$0xff]
    %v180 = vld [vmem:[%s170 + $0x48] sm:$0xff]
    %v181 = vld [vmem:[%s170 + $0x50] sm:$0xff]
    %v182 = vld [vmem:[%s170 + $0x58] sm:$0xff]
    %v183 = vld [vmem:[%s170 + $0x60] sm:$0xff]
    %v184 = vld [vmem:[%s170 + $0x68] sm:$0xff]
    %v185 = vld [vmem:[%s170 + $0x70] sm:$0xff]
    %v186 = vld [vmem:[%s170 + $0x78] sm:$0xff]
    %187 = vmatprep.subr.mxu0 0.0
    %188 = vmatpush1.msra.mxu0 %v186
    %189 = vmatprep.subr.mxu0 0.0
    %190 = vmatpush1.msra.mxu0 %v185
    %191 = vmatprep.subr.mxu0 0.0
    %192 = vmatpush1.msra.mxu0 %v184
    %193 = vmatprep.subr.mxu0 0.0
    %194 = vmatpush1.msra.mxu0 %v183
    %195 = vmatprep.subr.mxu0 0.0
    %196 = vmatpush1.msra.mxu0 %v182
    %197 = vmatprep.subr.mxu0 0.0
    %198 = vmatpush1.msra.mxu0 %v181
    %199 = vmatprep.subr.mxu0 0.0
    %200 = vmatpush1.msra.mxu0 %v180
    %201 = vmatprep.subr.mxu0 0.0
    %202 = vmatpush1.msra.mxu0 %v179
    %203 = vmatprep.subr.mxu0 0.0
    %204 = vmatpush1.msra.mxu0 %v178
    %205 = vmatprep.subr.mxu0 0.0
    %206 = vmatpush1.msra.mxu0 %v177
    %207 = vmatprep.subr.mxu0 0.0
    %208 = vmatpush1.msra.mxu0 %v176
    %209 = vmatprep.subr.mxu0 0.0
    %210 = vmatpush1.msra.mxu0 %v175
    %211 = vmatprep.subr.mxu0 0.0
    %212 = vmatpush1.msra.mxu0 %v174
    %213 = vmatprep.subr.mxu0 0.0
    %214 = vmatpush1.msra.mxu0 %v173
    %215 = vmatprep.subr.mxu0 0.0
    %216 = vmatpush1.msra.mxu0 %v172
    %217 = vmatprep.subr.mxu0 0.0
    %218 = vmatpush1.msra.mxu0 %v171
    %219 = vmatprep.subr.mxu0 0.0
    %220 = vmatpush2.msra.mxu0 0.0
    %221 = vmatprep.subr.mxu0 0.0
    %222 = vmatpush2.msra.mxu0 0.0
    %223 = vmatprep.subr.mxu0 0.0
    %224 = vmatpush2.msra.mxu0 0.0
    %225 = vmatprep.subr.mxu0 0.0
    %226 = vmatpush2.msra.mxu0 0.0
    %227 = vmatprep.subr.mxu0 0.0
    %228 = vmatpush2.msra.mxu0 0.0
    %229 = vmatprep.subr.mxu0 0.0
    %230 = vmatpush2.msra.mxu0 0.0
    %231 = vmatprep.subr.mxu0 0.0
    %232 = vmatpush2.msra.mxu0 0.0
    %233 = vmatprep.subr.mxu0 0.0
    %234 = vmatpush2.msra.mxu0 0.0
    %235 = vmatprep.subr.mxu0 0.0
    %236 = vmatpush2.msra.mxu0 0.0
    %237 = vmatprep.subr.mxu0 0.0
    %238 = vmatpush2.msra.mxu0 0.0
    %239 = vmatprep.subr.mxu0 0.0
    %240 = vmatpush2.msra.mxu0 0.0
    %241 = vmatprep.subr.mxu0 0.0
    %242 = vmatpush2.msra.mxu0 0.0
    %243 = vmatprep.subr.mxu0 0.0
    %244 = vmatpush2.msra.mxu0 0.0
    %245 = vmatprep.subr.mxu0 0.0
    %246 = vmatpush2.msra.mxu0 0.0
    %247 = vmatprep.subr.mxu0 0.0
    %248 = vmatpush2.msra.mxu0 0.0
    %249 = vmatprep.subr.mxu0 0.0
    %250 = vmatpush2.msra.mxu0 0.0
    %251 = vmatprep.mubr.f32.mxu0 0.0
    %252 = vmatmul.mubr.f32.gmra.mxu0 %v77
    %v253 = vpop.f32.mrf.mxu0
    %v254 = vadd.f32 0.0, %v253
    %v255 = vpop.f32.mrf.mxu0
    %256 = vmatprep.mubr.f32.mxu0 0.0
    %257 = vmatmul.mubr.f32.gmra.mxu0 %v78
    %v258 = vpop.f32.mrf.mxu0
    %v259 = vadd.f32 0.0, %v258
    %v260 = vpop.f32.mrf.mxu0
    %261 = vdwg.mxu0
    %s262 = scalar_lea.vmem [#allocation2], 256
    %v263 = vld [vmem:[%s262] sm:$0xff]
    %v264 = vld [vmem:[%s262 + $0x8] sm:$0xff]
    %v265 = vld [vmem:[%s262 + $0x10] sm:$0xff]
    %v266 = vld [vmem:[%s262 + $0x18] sm:$0xff]
    %v267 = vld [vmem:[%s262 + $0x20] sm:$0xff]
    %v268 = vld [vmem:[%s262 + $0x28] sm:$0xff]
    %v269 = vld [vmem:[%s262 + $0x30] sm:$0xff]
    %v270 = vld [vmem:[%s262 + $0x38] sm:$0xff]
    %v271 = vld [vmem:[%s262 + $0x40] sm:$0xff]
    %v272 = vld [vmem:[%s262 + $0x48] sm:$0xff]
    %v273 = vld [vmem:[%s262 + $0x50] sm:$0xff]
    %v274 = vld [vmem:[%s262 + $0x58] sm:$0xff]
    %v275 = vld [vmem:[%s262 + $0x60] sm:$0xff]
    %v276 = vld [vmem:[%s262 + $0x68] sm:$0xff]
    %v277 = vld [vmem:[%s262 + $0x70] sm:$0xff]
    %v278 = vld [vmem:[%s262 + $0x78] sm:$0xff]
    %279 = vmatprep.subr.mxu0 0.0
    %280 = vmatpush1.msra.mxu0 %v278
    %281 = vmatprep.subr.mxu0 0.0
    %282 = vmatpush1.msra.mxu0 %v277
    %283 = vmatprep.subr.mxu0 0.0
    %284 = vmatpush1.msra.mxu0 %v276
    %285 = vmatprep.subr.mxu0 0.0
    %286 = vmatpush1.msra.mxu0 %v275
    %287 = vmatprep.subr.mxu0 0.0
    %288 = vmatpush1.msra.mxu0 %v274
    %289 = vmatprep.subr.mxu0 0.0
    %290 = vmatpush1.msra.mxu0 %v273
    %291 = vmatprep.subr.mxu0 0.0
    %292 = vmatpush1.msra.mxu0 %v272
    %293 = vmatprep.subr.mxu0 0.0
    %294 = vmatpush1.msra.mxu0 %v271
    %295 = vmatprep.subr.mxu0 0.0
    %296 = vmatpush1.msra.mxu0 %v270
    %297 = vmatprep.subr.mxu0 0.0
    %298 = vmatpush1.msra.mxu0 %v269
    %299 = vmatprep.subr.mxu0 0.0
    %300 = vmatpush1.msra.mxu0 %v268
    %301 = vmatprep.subr.mxu0 0.0
    %302 = vmatpush1.msra.mxu0 %v267
    %303 = vmatprep.subr.mxu0 0.0
    %304 = vmatpush1.msra.mxu0 %v266
    %305 = vmatprep.subr.mxu0 0.0
    %306 = vmatpush1.msra.mxu0 %v265
    %307 = vmatprep.subr.mxu0 0.0
    %308 = vmatpush1.msra.mxu0 %v264
    %309 = vmatprep.subr.mxu0 0.0
    %310 = vmatpush1.msra.mxu0 %v263
    %311 = vmatprep.subr.mxu0 0.0
    %312 = vmatpush2.msra.mxu0 0.0
    %313 = vmatprep.subr.mxu0 0.0
    %314 = vmatpush2.msra.mxu0 0.0
    %315 = vmatprep.subr.mxu0 0.0
    %316 = vmatpush2.msra.mxu0 0.0
    %317 = vmatprep.subr.mxu0 0.0
    %318 = vmatpush2.msra.mxu0 0.0
    %319 = vmatprep.subr.mxu0 0.0
    %320 = vmatpush2.msra.mxu0 0.0
    %321 = vmatprep.subr.mxu0 0.0
    %322 = vmatpush2.msra.mxu0 0.0
    %323 = vmatprep.subr.mxu0 0.0
    %324 = vmatpush2.msra.mxu0 0.0
    %325 = vmatprep.subr.mxu0 0.0
    %326 = vmatpush2.msra.mxu0 0.0
    %327 = vmatprep.subr.mxu0 0.0
    %328 = vmatpush2.msra.mxu0 0.0
    %329 = vmatprep.subr.mxu0 0.0
    %330 = vmatpush2.msra.mxu0 0.0
    %331 = vmatprep.subr.mxu0 0.0
    %332 = vmatpush2.msra.mxu0 0.0
    %333 = vmatprep.subr.mxu0 0.0
    %334 = vmatpush2.msra.mxu0 0.0
    %335 = vmatprep.subr.mxu0 0.0
    %336 = vmatpush2.msra.mxu0 0.0
    %337 = vmatprep.subr.mxu0 0.0
    %338 = vmatpush2.msra.mxu0 0.0
    %339 = vmatprep.subr.mxu0 0.0
    %340 = vmatpush2.msra.mxu0 0.0
    %341 = vmatprep.subr.mxu0 0.0
    %342 = vmatpush2.msra.mxu0 0.0
    %343 = vmatprep.mubr.f32.mxu0 0.0
    %344 = vmatmul.mubr.f32.gmra.mxu0 %v77
    %v345 = vpop.f32.mrf.mxu0
    %v346 = vadd.f32 0.0, %v345
    %v347 = vpop.f32.mrf.mxu0
    %348 = vmatprep.mubr.f32.mxu0 0.0
    %349 = vmatmul.mubr.f32.gmra.mxu0 %v78
    %v350 = vpop.f32.mrf.mxu0
    %v351 = vadd.f32 0.0, %v350
    %v352 = vpop.f32.mrf.mxu0
    %353 = vdwg.mxu0
    %v355 = vrot.slane %v162, 1
    %vm358 = vcmask 1040384
    %v359 = vrot.slane %v162, 7
    %v360 = vrot.slane %v167, 7
    %v361 = vsel %vm358, %v359, %v360
    %v364 = vsel %vm358, %v355, %v359
    %vm367 = vcmask 1046528
    %v368 = vrot.slane %v346, 1
    %v369 = vrot.slane %v351, 1
    %v370 = vsel %vm367, %v368, %v369
    %v373 = vrot.slane %v351, 7
    %v375 = vsel %vm367, %v369, %v373
    %v376 = vadd.f32 %v364, %v254
    %v377 = vadd.f32 %v361, %v259
    %v378 = vadd.f32 %v376, %v370
    %v379 = vadd.f32 %v377, %v375
    %v380 = vmax.f32 %v378, 0.0
    %v381 = vmax.f32 %v379, 0.0
    %v382 = vld [vmem:[#allocation5] sm:$0xff]
    %v383 = vld [vmem:[#allocation5 + $0x8] sm:$0xff]
    %v384 = vld [vmem:[#allocation5 + $0x10] sm:$0xff]
    %v385 = vld [vmem:[#allocation5 + $0x18] sm:$0xff]
    %v386 = vld [vmem:[#allocation5 + $0x20] sm:$0xff]
    %v387 = vld [vmem:[#allocation5 + $0x28] sm:$0xff]
    %v388 = vld [vmem:[#allocation5 + $0x30] sm:$0xff]
    %v389 = vld [vmem:[#allocation5 + $0x38] sm:$0xff]
    %v390 = vld [vmem:[#allocation5 + $0x40] sm:$0xff]
    %v391 = vld [vmem:[#allocation5 + $0x48] sm:$0xff]
    %v392 = vld [vmem:[#allocation5 + $0x50] sm:$0xff]
    %v393 = vld [vmem:[#allocation5 + $0x58] sm:$0xff]
    %v394 = vld [vmem:[#allocation5 + $0x60] sm:$0xff]
    %v395 = vld [vmem:[#allocation5 + $0x68] sm:$0xff]
    %v396 = vld [vmem:[#allocation5 + $0x70] sm:$0xff]
    %v397 = vld [vmem:[#allocation5 + $0x78] sm:$0xff]
    %398 = vmatprep.subr.mxu0 0.0
    %399 = vmatpush1.msra.mxu0 %v397
    %400 = vmatprep.subr.mxu0 0.0
    %401 = vmatpush1.msra.mxu0 %v396
    %402 = vmatprep.subr.mxu0 0.0
    %403 = vmatpush1.msra.mxu0 %v395
    %404 = vmatprep.subr.mxu0 0.0
    %405 = vmatpush1.msra.mxu0 %v394
    %406 = vmatprep.subr.mxu0 0.0
    %407 = vmatpush1.msra.mxu0 %v393
    %408 = vmatprep.subr.mxu0 0.0
    %409 = vmatpush1.msra.mxu0 %v392
    %410 = vmatprep.subr.mxu0 0.0
    %411 = vmatpush1.msra.mxu0 %v391
    %412 = vmatprep.subr.mxu0 0.0
    %413 = vmatpush1.msra.mxu0 %v390
    %414 = vmatprep.subr.mxu0 0.0
    %415 = vmatpush1.msra.mxu0 %v389
    %416 = vmatprep.subr.mxu0 0.0
    %417 = vmatpush1.msra.mxu0 %v388
    %418 = vmatprep.subr.mxu0 0.0
    %419 = vmatpush1.msra.mxu0 %v387
    %420 = vmatprep.subr.mxu0 0.0
    %421 = vmatpush1.msra.mxu0 %v386
    %422 = vmatprep.subr.mxu0 0.0
    %423 = vmatpush1.msra.mxu0 %v385
    %424 = vmatprep.subr.mxu0 0.0
    %425 = vmatpush1.msra.mxu0 %v384
    %426 = vmatprep.subr.mxu0 0.0
    %427 = vmatpush1.msra.mxu0 %v383
    %428 = vmatprep.subr.mxu0 0.0
    %429 = vmatpush1.msra.mxu0 %v382
    %430 = vmatprep.subr.mxu0 0.0
    %431 = vmatpush2.msra.mxu0 0.0
    %432 = vmatprep.subr.mxu0 0.0
    %433 = vmatpush2.msra.mxu0 0.0
    %434 = vmatprep.subr.mxu0 0.0
    %435 = vmatpush2.msra.mxu0 0.0
    %436 = vmatprep.subr.mxu0 0.0
    %437 = vmatpush2.msra.mxu0 0.0
    %438 = vmatprep.subr.mxu0 0.0
    %439 = vmatpush2.msra.mxu0 0.0
    %440 = vmatprep.subr.mxu0 0.0
    %441 = vmatpush2.msra.mxu0 0.0
    %442 = vmatprep.subr.mxu0 0.0
    %443 = vmatpush2.msra.mxu0 0.0
    %444 = vmatprep.subr.mxu0 0.0
    %445 = vmatpush2.msra.mxu0 0.0
    %446 = vmatprep.subr.mxu0 0.0
    %447 = vmatpush2.msra.mxu0 0.0
    %448 = vmatprep.subr.mxu0 0.0
    %449 = vmatpush2.msra.mxu0 0.0
    %450 = vmatprep.subr.mxu0 0.0
    %451 = vmatpush2.msra.mxu0 0.0
    %452 = vmatprep.subr.mxu0 0.0
    %453 = vmatpush2.msra.mxu0 0.0
    %454 = vmatprep.subr.mxu0 0.0
    %455 = vmatpush2.msra.mxu0 0.0
    %456 = vmatprep.subr.mxu0 0.0
    %457 = vmatpush2.msra.mxu0 0.0
    %458 = vmatprep.subr.mxu0 0.0
    %459 = vmatpush2.msra.mxu0 0.0
    %460 = vmatprep.subr.mxu0 0.0
    %461 = vmatpush2.msra.mxu0 0.0
    %462 = vmatprep.mubr.f32.mxu0 0.0
    %463 = vmatmul.mubr.f32.gmra.mxu0 %v380
    %v464 = vpop.f32.mrf.mxu0
    %v465 = vadd.f32 0.0, %v464
    %v466 = vpop.f32.mrf.mxu0
    %467 = vmatprep.mubr.f32.mxu0 0.0
    %468 = vmatmul.mubr.f32.gmra.mxu0 %v381
    %v469 = vpop.f32.mrf.mxu0
    %v470 = vadd.f32 0.0, %v469
    %v471 = vpop.f32.mrf.mxu0
    %472 = vdwg.mxu0
    %s473 = scalar_lea.vmem [#allocation5], 128
    %v474 = vld [vmem:[%s473] sm:$0xff]
    %v475 = vld [vmem:[%s473 + $0x8] sm:$0xff]
    %v476 = vld [vmem:[%s473 + $0x10] sm:$0xff]
    %v477 = vld [vmem:[%s473 + $0x18] sm:$0xff]
    %v478 = vld [vmem:[%s473 + $0x20] sm:$0xff]
    %v479 = vld [vmem:[%s473 + $0x28] sm:$0xff]
    %v480 = vld [vmem:[%s473 + $0x30] sm:$0xff]
    %v481 = vld [vmem:[%s473 + $0x38] sm:$0xff]
    %v482 = vld [vmem:[%s473 + $0x40] sm:$0xff]
    %v483 = vld [vmem:[%s473 + $0x48] sm:$0xff]
    %v484 = vld [vmem:[%s473 + $0x50] sm:$0xff]
    %v485 = vld [vmem:[%s473 + $0x58] sm:$0xff]
    %v486 = vld [vmem:[%s473 + $0x60] sm:$0xff]
    %v487 = vld [vmem:[%s473 + $0x68] sm:$0xff]
    %v488 = vld [vmem:[%s473 + $0x70] sm:$0xff]
    %v489 = vld [vmem:[%s473 + $0x78] sm:$0xff]
    %490 = vmatprep.subr.mxu0 0.0
    %491 = vmatpush1.msra.mxu0 %v489
    %492 = vmatprep.subr.mxu0 0.0
    %493 = vmatpush1.msra.mxu0 %v488
    %494 = vmatprep.subr.mxu0 0.0
    %495 = vmatpush1.msra.mxu0 %v487
    %496 = vmatprep.subr.mxu0 0.0
    %497 = vmatpush1.msra.mxu0 %v486
    %498 = vmatprep.subr.mxu0 0.0
    %499 = vmatpush1.msra.mxu0 %v485
    %500 = vmatprep.subr.mxu0 0.0
    %501 = vmatpush1.msra.mxu0 %v484
    %502 = vmatprep.subr.mxu0 0.0
    %503 = vmatpush1.msra.mxu0 %v483
    %504 = vmatprep.subr.mxu0 0.0
    %505 = vmatpush1.msra.mxu0 %v482
    %506 = vmatprep.subr.mxu0 0.0
    %507 = vmatpush1.msra.mxu0 %v481
    %508 = vmatprep.subr.mxu0 0.0
    %509 = vmatpush1.msra.mxu0 %v480
    %510 = vmatprep.subr.mxu0 0.0
    %511 = vmatpush1.msra.mxu0 %v479
    %512 = vmatprep.subr.mxu0 0.0
    %513 = vmatpush1.msra.mxu0 %v478
    %514 = vmatprep.subr.mxu0 0.0
    %515 = vmatpush1.msra.mxu0 %v477
    %516 = vmatprep.subr.mxu0 0.0
    %517 = vmatpush1.msra.mxu0 %v476
    %518 = vmatprep.subr.mxu0 0.0
    %519 = vmatpush1.msra.mxu0 %v475
    %520 = vmatprep.subr.mxu0 0.0
    %521 = vmatpush1.msra.mxu0 %v474
    %522 = vmatprep.subr.mxu0 0.0
    %523 = vmatpush2.msra.mxu0 0.0
    %524 = vmatprep.subr.mxu0 0.0
    %525 = vmatpush2.msra.mxu0 0.0
    %526 = vmatprep.subr.mxu0 0.0
    %527 = vmatpush2.msra.mxu0 0.0
    %528 = vmatprep.subr.mxu0 0.0
    %529 = vmatpush2.msra.mxu0 0.0
    %530 = vmatprep.subr.mxu0 0.0
    %531 = vmatpush2.msra.mxu0 0.0
    %532 = vmatprep.subr.mxu0 0.0
    %533 = vmatpush2.msra.mxu0 0.0
    %534 = vmatprep.subr.mxu0 0.0
    %535 = vmatpush2.msra.mxu0 0.0
    %536 = vmatprep.subr.mxu0 0.0
    %537 = vmatpush2.msra.mxu0 0.0
    %538 = vmatprep.subr.mxu0 0.0
    %539 = vmatpush2.msra.mxu0 0.0
    %540 = vmatprep.subr.mxu0 0.0
    %541 = vmatpush2.msra.mxu0 0.0
    %542 = vmatprep.subr.mxu0 0.0
    %543 = vmatpush2.msra.mxu0 0.0
    %544 = vmatprep.subr.mxu0 0.0
    %545 = vmatpush2.msra.mxu0 0.0
    %546 = vmatprep.subr.mxu0 0.0
    %547 = vmatpush2.msra.mxu0 0.0
    %548 = vmatprep.subr.mxu0 0.0
    %549 = vmatpush2.msra.mxu0 0.0
    %550 = vmatprep.subr.mxu0 0.0
    %551 = vmatpush2.msra.mxu0 0.0
    %552 = vmatprep.subr.mxu0 0.0
    %553 = vmatpush2.msra.mxu0 0.0
    %554 = vmatprep.mubr.f32.mxu0 0.0
    %555 = vmatmul.mubr.f32.gmra.mxu0 %v380
    %v556 = vpop.f32.mrf.mxu0
    %v557 = vadd.f32 0.0, %v556
    %v558 = vpop.f32.mrf.mxu0
    %559 = vmatprep.mubr.f32.mxu0 0.0
    %560 = vmatmul.mubr.f32.gmra.mxu0 %v381
    %v561 = vpop.f32.mrf.mxu0
    %v562 = vadd.f32 0.0, %v561
    %v563 = vpop.f32.mrf.mxu0
    %564 = vdwg.mxu0
    %s565 = scalar_lea.vmem [#allocation5], 256
    %v566 = vld [vmem:[%s565] sm:$0xff]
    %v567 = vld [vmem:[%s565 + $0x8] sm:$0xff]
    %v568 = vld [vmem:[%s565 + $0x10] sm:$0xff]
    %v569 = vld [vmem:[%s565 + $0x18] sm:$0xff]
    %v570 = vld [vmem:[%s565 + $0x20] sm:$0xff]
    %v571 = vld [vmem:[%s565 + $0x28] sm:$0xff]
    %v572 = vld [vmem:[%s565 + $0x30] sm:$0xff]
    %v573 = vld [vmem:[%s565 + $0x38] sm:$0xff]
    %v574 = vld [vmem:[%s565 + $0x40] sm:$0xff]
    %v575 = vld [vmem:[%s565 + $0x48] sm:$0xff]
    %v576 = vld [vmem:[%s565 + $0x50] sm:$0xff]
    %v577 = vld [vmem:[%s565 + $0x58] sm:$0xff]
    %v578 = vld [vmem:[%s565 + $0x60] sm:$0xff]
    %v579 = vld [vmem:[%s565 + $0x68] sm:$0xff]
    %v580 = vld [vmem:[%s565 + $0x70] sm:$0xff]
    %v581 = vld [vmem:[%s565 + $0x78] sm:$0xff]
    %582 = vmatprep.subr.mxu0 0.0
    %583 = vmatpush1.msra.mxu0 %v581
    %584 = vmatprep.subr.mxu0 0.0
    %585 = vmatpush1.msra.mxu0 %v580
    %586 = vmatprep.subr.mxu0 0.0
    %587 = vmatpush1.msra.mxu0 %v579
    %588 = vmatprep.subr.mxu0 0.0
    %589 = vmatpush1.msra.mxu0 %v578
    %590 = vmatprep.subr.mxu0 0.0
    %591 = vmatpush1.msra.mxu0 %v577
    %592 = vmatprep.subr.mxu0 0.0
    %593 = vmatpush1.msra.mxu0 %v576
    %594 = vmatprep.subr.mxu0 0.0
    %595 = vmatpush1.msra.mxu0 %v575
    %596 = vmatprep.subr.mxu0 0.0
    %597 = vmatpush1.msra.mxu0 %v574
    %598 = vmatprep.subr.mxu0 0.0
    %599 = vmatpush1.msra.mxu0 %v573
    %600 = vmatprep.subr.mxu0 0.0
    %601 = vmatpush1.msra.mxu0 %v572
    %602 = vmatprep.subr.mxu0 0.0
    %603 = vmatpush1.msra.mxu0 %v571
    %604 = vmatprep.subr.mxu0 0.0
    %605 = vmatpush1.msra.mxu0 %v570
    %606 = vmatprep.subr.mxu0 0.0
    %607 = vmatpush1.msra.mxu0 %v569
    %608 = vmatprep.subr.mxu0 0.0
    %609 = vmatpush1.msra.mxu0 %v568
    %610 = vmatprep.subr.mxu0 0.0
    %611 = vmatpush1.msra.mxu0 %v567
    %612 = vmatprep.subr.mxu0 0.0
    %613 = vmatpush1.msra.mxu0 %v566
    %614 = vmatprep.subr.mxu0 0.0
    %615 = vmatpush2.msra.mxu0 0.0
    %616 = vmatprep.subr.mxu0 0.0
    %617 = vmatpush2.msra.mxu0 0.0
    %618 = vmatprep.subr.mxu0 0.0
    %619 = vmatpush2.msra.mxu0 0.0
    %620 = vmatprep.subr.mxu0 0.0
    %621 = vmatpush2.msra.mxu0 0.0
    %622 = vmatprep.subr.mxu0 0.0
    %623 = vmatpush2.msra.mxu0 0.0
    %624 = vmatprep.subr.mxu0 0.0
    %625 = vmatpush2.msra.mxu0 0.0
    %626 = vmatprep.subr.mxu0 0.0
    %627 = vmatpush2.msra.mxu0 0.0
    %628 = vmatprep.subr.mxu0 0.0
    %629 = vmatpush2.msra.mxu0 0.0
    %630 = vmatprep.subr.mxu0 0.0
    %631 = vmatpush2.msra.mxu0 0.0
    %632 = vmatprep.subr.mxu0 0.0
    %633 = vmatpush2.msra.mxu0 0.0
    %634 = vmatprep.subr.mxu0 0.0
    %635 = vmatpush2.msra.mxu0 0.0
    %636 = vmatprep.subr.mxu0 0.0
    %637 = vmatpush2.msra.mxu0 0.0
    %638 = vmatprep.subr.mxu0 0.0
    %639 = vmatpush2.msra.mxu0 0.0
    %640 = vmatprep.subr.mxu0 0.0
    %641 = vmatpush2.msra.mxu0 0.0
    %642 = vmatprep.subr.mxu0 0.0
    %643 = vmatpush2.msra.mxu0 0.0
    %644 = vmatprep.subr.mxu0 0.0
    %645 = vmatpush2.msra.mxu0 0.0
    %646 = vmatprep.mubr.f32.mxu0 0.0
    %647 = vmatmul.mubr.f32.gmra.mxu0 %v380
    %v648 = vpop.f32.mrf.mxu0
    %v649 = vadd.f32 0.0, %v648
    %v650 = vpop.f32.mrf.mxu0
    %651 = vmatprep.mubr.f32.mxu0 0.0
    %652 = vmatmul.mubr.f32.gmra.mxu0 %v381
    %v653 = vpop.f32.mrf.mxu0
    %v654 = vadd.f32 0.0, %v653
    %v655 = vpop.f32.mrf.mxu0
    %656 = vdwg.mxu0
    %v658 = vrot.slane %v465, 1
    %v661 = vrot.slane %v465, 7
    %v662 = vrot.slane %v470, 7
    %v663 = vsel %vm358, %v661, %v662
    %v666 = vsel %vm358, %v658, %v661
    %v669 = vrot.slane %v649, 1
    %v670 = vrot.slane %v654, 1
    %v671 = vsel %vm367, %v669, %v670
    %v674 = vrot.slane %v654, 7
    %v676 = vsel %vm367, %v670, %v674
    %v677 = vadd.f32 %v666, %v557
    %v678 = vadd.f32 %v663, %v562
    %v679 = vadd.f32 %v677, %v671
    %v680 = vadd.f32 %v678, %v676
    %v681 = vmax.f32 %v679, 0.0
    %v682 = vmax.f32 %v680, 0.0
    %v683 = vld [vmem:[%s3] sm:$0xff]
    %v684 = vld [vmem:[%s3 + $0x8] sm:$0xff]
    %v685 = vld [vmem:[%s3 + $0x10] sm:$0xff]
    %v686 = vld [vmem:[%s3 + $0x18] sm:$0xff]
    %v687 = vld [vmem:[%s3 + $0x20] sm:$0xff]
    %v688 = vld [vmem:[%s3 + $0x28] sm:$0xff]
    %v689 = vld [vmem:[%s3 + $0x30] sm:$0xff]
    %v690 = vld [vmem:[%s3 + $0x38] sm:$0xff]
    %v691 = vld [vmem:[%s3 + $0x40] sm:$0xff]
    %v692 = vld [vmem:[%s3 + $0x48] sm:$0xff]
    %v693 = vld [vmem:[%s3 + $0x50] sm:$0xff]
    %v694 = vld [vmem:[%s3 + $0x58] sm:$0xff]
    %v695 = vld [vmem:[%s3 + $0x60] sm:$0xff]
    %v696 = vld [vmem:[%s3 + $0x68] sm:$0xff]
    %v697 = vld [vmem:[%s3 + $0x70] sm:$0xff]
    %v698 = vld [vmem:[%s3 + $0x78] sm:$0xff]
    %v699 = vld [vmem:[%s4] sm:$0x1]
    %v701 = vlaneseq
    %v702 = vshrl.u32 %v701, 7
    %v703 = vsub.s32 0, %v702
    %v704 = vrot.slane %v699, %v703
    %706 = vmatprep.subr.mxu0 0.0
    %707 = vmatpush1.msra.mxu0 %v698
    %708 = vmatprep.subr.mxu0 0.0
    %709 = vmatpush1.msra.mxu0 %v697
    %710 = vmatprep.subr.mxu0 0.0
    %711 = vmatpush1.msra.mxu0 %v696
    %712 = vmatprep.subr.mxu0 0.0
    %713 = vmatpush1.msra.mxu0 %v695
    %714 = vmatprep.subr.mxu0 0.0
    %715 = vmatpush1.msra.mxu0 %v694
    %716 = vmatprep.subr.mxu0 0.0
    %717 = vmatpush1.msra.mxu0 %v693
    %718 = vmatprep.subr.mxu0 0.0
    %719 = vmatpush1.msra.mxu0 %v692
    %720 = vmatprep.subr.mxu0 0.0
    %721 = vmatpush1.msra.mxu0 %v691
    %722 = vmatprep.subr.mxu0 0.0
    %723 = vmatpush1.msra.mxu0 %v690
    %724 = vmatprep.subr.mxu0 0.0
    %725 = vmatpush1.msra.mxu0 %v689
    %726 = vmatprep.subr.mxu0 0.0
    %727 = vmatpush1.msra.mxu0 %v688
    %728 = vmatprep.subr.mxu0 0.0
    %729 = vmatpush1.msra.mxu0 %v687
    %730 = vmatprep.subr.mxu0 0.0
    %731 = vmatpush1.msra.mxu0 %v686
    %732 = vmatprep.subr.mxu0 0.0
    %733 = vmatpush1.msra.mxu0 %v685
    %734 = vmatprep.subr.mxu0 0.0
    %735 = vmatpush1.msra.mxu0 %v684
    %736 = vmatprep.subr.mxu0 0.0
    %737 = vmatpush1.msra.mxu0 %v683
    %738 = vmatprep.subr.mxu0 0.0
    %739 = vmatpush2.msra.mxu0 0.0
    %740 = vmatprep.subr.mxu0 0.0
    %741 = vmatpush2.msra.mxu0 0.0
    %742 = vmatprep.subr.mxu0 0.0
    %743 = vmatpush2.msra.mxu0 0.0
    %744 = vmatprep.subr.mxu0 0.0
    %745 = vmatpush2.msra.mxu0 0.0
    %746 = vmatprep.subr.mxu0 0.0
    %747 = vmatpush2.msra.mxu0 0.0
    %748 = vmatprep.subr.mxu0 0.0
    %749 = vmatpush2.msra.mxu0 0.0
    %750 = vmatprep.subr.mxu0 0.0
    %751 = vmatpush2.msra.mxu0 0.0
    %752 = vmatprep.subr.mxu0 0.0
    %753 = vmatpush2.msra.mxu0 0.0
    %754 = vmatprep.subr.mxu0 0.0
    %755 = vmatpush2.msra.mxu0 0.0
    %756 = vmatprep.subr.mxu0 0.0
    %757 = vmatpush2.msra.mxu0 0.0
    %758 = vmatprep.subr.mxu0 0.0
    %759 = vmatpush2.msra.mxu0 0.0
    %760 = vmatprep.subr.mxu0 0.0
    %761 = vmatpush2.msra.mxu0 0.0
    %762 = vmatprep.subr.mxu0 0.0
    %763 = vmatpush2.msra.mxu0 0.0
    %764 = vmatprep.subr.mxu0 0.0
    %765 = vmatpush2.msra.mxu0 0.0
    %766 = vmatprep.subr.mxu0 0.0
    %767 = vmatpush2.msra.mxu0 0.0
    %768 = vmatprep.subr.mxu0 0.0
    %769 = vmatpush2.msra.mxu0 0.0
    %770 = vmatprep.mubr.f32.mxu0 0.0
    %771 = vmatmul.mubr.f32.gmra.mxu0 %v681
    %v772 = vpop.f32.mrf.mxu0
    %v773 = vadd.f32 %v704, %v772
    %v774 = vpop.f32.mrf.mxu0
    %775 = vmatprep.mubr.f32.mxu0 0.0
    %776 = vmatmul.mubr.f32.gmra.mxu0 %v682
    %v777 = vpop.f32.mrf.mxu0
    %v778 = vadd.f32 %v704, %v777
    %v779 = vpop.f32.mrf.mxu0
    %780 = vdwg.mxu0
    %v781 = vtanh.pop %v773
    %v782 = vtanh.pop %v778
    %v783 = vld [vmem:[#allocation7] sm:$0xff]
    %v784 = vld [vmem:[#allocation7 + $0x8] sm:$0xff]
    %v785 = vld [vmem:[#allocation7 + $0x10] sm:$0xff]
    %v786 = vld [vmem:[#allocation7 + $0x18] sm:$0xff]
    %v787 = vld [vmem:[#allocation7 + $0x20] sm:$0xff]
    %v788 = vld [vmem:[#allocation7 + $0x28] sm:$0xff]
    %v789 = vld [vmem:[#allocation7 + $0x30] sm:$0xff]
    %v790 = vld [vmem:[#allocation7 + $0x38] sm:$0xff]
    %v791 = vld [vmem:[#allocation7 + $0x40] sm:$0xff]
    %v792 = vld [vmem:[#allocation7 + $0x48] sm:$0xff]
    %v793 = vld [vmem:[#allocation7 + $0x50] sm:$0xff]
    %v794 = vld [vmem:[#allocation7 + $0x58] sm:$0xff]
    %v795 = vld [vmem:[#allocation7 + $0x60] sm:$0xff]
    %v796 = vld [vmem:[#allocation7 + $0x68] sm:$0xff]
    %v797 = vld [vmem:[#allocation7 + $0x70] sm:$0xff]
    %v798 = vld [vmem:[#allocation7 + $0x78] sm:$0xff]
    %v799 = vld [vmem:[%s6] sm:$0x1]
    %v801 = vlaneseq
    %v802 = vshrl.u32 %v801, 7
    %v803 = vsub.s32 0, %v802
    %v804 = vrot.slane %v799, %v803
    %806 = vmatprep.subr.mxu0 0.0
    %807 = vmatpush1.msra.mxu0 %v798
    %808 = vmatprep.subr.mxu0 0.0
    %809 = vmatpush1.msra.mxu0 %v797
    %810 = vmatprep.subr.mxu0 0.0
    %811 = vmatpush1.msra.mxu0 %v796
    %812 = vmatprep.subr.mxu0 0.0
    %813 = vmatpush1.msra.mxu0 %v795
    %814 = vmatprep.subr.mxu0 0.0
    %815 = vmatpush1.msra.mxu0 %v794
    %816 = vmatprep.subr.mxu0 0.0
    %817 = vmatpush1.msra.mxu0 %v793
    %818 = vmatprep.subr.mxu0 0.0
    %819 = vmatpush1.msra.mxu0 %v792
    %820 = vmatprep.subr.mxu0 0.0
    %821 = vmatpush1.msra.mxu0 %v791
    %822 = vmatprep.subr.mxu0 0.0
    %823 = vmatpush1.msra.mxu0 %v790
    %824 = vmatprep.subr.mxu0 0.0
    %825 = vmatpush1.msra.mxu0 %v789
    %826 = vmatprep.subr.mxu0 0.0
    %827 = vmatpush1.msra.mxu0 %v788
    %828 = vmatprep.subr.mxu0 0.0
    %829 = vmatpush1.msra.mxu0 %v787
    %830 = vmatprep.subr.mxu0 0.0
    %831 = vmatpush1.msra.mxu0 %v786
    %832 = vmatprep.subr.mxu0 0.0
    %833 = vmatpush1.msra.mxu0 %v785
    %834 = vmatprep.subr.mxu0 0.0
    %835 = vmatpush1.msra.mxu0 %v784
    %836 = vmatprep.subr.mxu0 0.0
    %837 = vmatpush1.msra.mxu0 %v783
    %838 = vmatprep.subr.mxu0 0.0
    %839 = vmatpush2.msra.mxu0 0.0
    %840 = vmatprep.subr.mxu0 0.0
    %841 = vmatpush2.msra.mxu0 0.0
    %842 = vmatprep.subr.mxu0 0.0
    %843 = vmatpush2.msra.mxu0 0.0
    %844 = vmatprep.subr.mxu0 0.0
    %845 = vmatpush2.msra.mxu0 0.0
    %846 = vmatprep.subr.mxu0 0.0
    %847 = vmatpush2.msra.mxu0 0.0
    %848 = vmatprep.subr.mxu0 0.0
    %849 = vmatpush2.msra.mxu0 0.0
    %850 = vmatprep.subr.mxu0 0.0
    %851 = vmatpush2.msra.mxu0 0.0
    %852 = vmatprep.subr.mxu0 0.0
    %853 = vmatpush2.msra.mxu0 0.0
    %854 = vmatprep.subr.mxu0 0.0
    %855 = vmatpush2.msra.mxu0 0.0
    %856 = vmatprep.subr.mxu0 0.0
    %857 = vmatpush2.msra.mxu0 0.0
    %858 = vmatprep.subr.mxu0 0.0
    %859 = vmatpush2.msra.mxu0 0.0
    %860 = vmatprep.subr.mxu0 0.0
    %861 = vmatpush2.msra.mxu0 0.0
    %862 = vmatprep.subr.mxu0 0.0
    %863 = vmatpush2.msra.mxu0 0.0
    %864 = vmatprep.subr.mxu0 0.0
    %865 = vmatpush2.msra.mxu0 0.0
    %866 = vmatprep.subr.mxu0 0.0
    %867 = vmatpush2.msra.mxu0 0.0
    %868 = vmatprep.subr.mxu0 0.0
    %869 = vmatpush2.msra.mxu0 0.0
    %870 = vmatprep.mubr.f32.mxu0 0.0
    %871 = vmatmul.mubr.f32.gmra.mxu0 %v781
    %v872 = vpop.f32.mrf.mxu0
    %v873 = vadd.f32 %v804, %v872
    %v874 = vpop.f32.mrf.mxu0
    %875 = vmatprep.mubr.f32.mxu0 0.0
    %876 = vmatmul.mubr.f32.gmra.mxu0 %v782
    %v877 = vpop.f32.mrf.mxu0
    %v878 = vadd.f32 %v804, %v877
    %v879 = vpop.f32.mrf.mxu0
    %880 = vdwg.mxu0
    %v881 = vxor.u32 %v873, 2147483648
    %v882 = vxor.u32 %v878, 2147483648
    %v883 = vmul.f32 %v881, 1.442695
    %v884 = vpow.pop %v883
    %v885 = vmul.f32 %v882, 1.442695
    %v886 = vpow.pop %v885
    %v887 = vadd.f32 %v884, 1.0
    %v888 = vadd.f32 %v886, 1.0
    %v889 = vrcp.pop %v887
    %v890 = vmul.f32 1.0, %v889
    %v891 = vrcp.pop %v888
    %v892 = vmul.f32 1.0, %v891
    %v893 = vld [vmem:[%s7] sm:$0xff]
    %v894 = vld [vmem:[%s7 + $0x8] sm:$0xff]
    %v895 = vld [vmem:[%s7 + $0x10] sm:$0xff]
    %v896 = vld [vmem:[%s7 + $0x18] sm:$0xff]
    %v897 = vld [vmem:[%s7 + $0x20] sm:$0xff]
    %v898 = vld [vmem:[%s7 + $0x28] sm:$0xff]
    %v899 = vld [vmem:[%s7 + $0x30] sm:$0xff]
    %v900 = vld [vmem:[%s7 + $0x38] sm:$0xff]
    %v901 = vld [vmem:[%s7 + $0x40] sm:$0xff]
    %v902 = vld [vmem:[%s7 + $0x48] sm:$0xff]
    %v903 = vld [vmem:[%s7 + $0x50] sm:$0xff]
    %v904 = vld [vmem:[%s7 + $0x58] sm:$0xff]
    %v905 = vld [vmem:[%s7 + $0x60] sm:$0xff]
    %v906 = vld [vmem:[%s7 + $0x68] sm:$0xff]
    %v907 = vld [vmem:[%s7 + $0x70] sm:$0xff]
    %v908 = vld [vmem:[%s7 + $0x78] sm:$0xff]
    %v909 = vld [vmem:[%s8] sm:$0x1]
    %v911 = vlaneseq
    %v912 = vshrl.u32 %v911, 7
    %v913 = vsub.s32 0, %v912
    %v914 = vrot.slane %v909, %v913
    %916 = vmatprep.subr.mxu0 0.0
    %917 = vmatpush1.msra.mxu0 %v908
    %918 = vmatprep.subr.mxu0 0.0
    %919 = vmatpush1.msra.mxu0 %v907
    %920 = vmatprep.subr.mxu0 0.0
    %921 = vmatpush1.msra.mxu0 %v906
    %922 = vmatprep.subr.mxu0 0.0
    %923 = vmatpush1.msra.mxu0 %v905
    %924 = vmatprep.subr.mxu0 0.0
    %925 = vmatpush1.msra.mxu0 %v904
    %926 = vmatprep.subr.mxu0 0.0
    %927 = vmatpush1.msra.mxu0 %v903
    %928 = vmatprep.subr.mxu0 0.0
    %929 = vmatpush1.msra.mxu0 %v902
    %930 = vmatprep.subr.mxu0 0.0
    %931 = vmatpush1.msra.mxu0 %v901
    %932 = vmatprep.subr.mxu0 0.0
    %933 = vmatpush1.msra.mxu0 %v900
    %934 = vmatprep.subr.mxu0 0.0
    %935 = vmatpush1.msra.mxu0 %v899
    %936 = vmatprep.subr.mxu0 0.0
    %937 = vmatpush1.msra.mxu0 %v898
    %938 = vmatprep.subr.mxu0 0.0
    %939 = vmatpush1.msra.mxu0 %v897
    %940 = vmatprep.subr.mxu0 0.0
    %941 = vmatpush1.msra.mxu0 %v896
    %942 = vmatprep.subr.mxu0 0.0
    %943 = vmatpush1.msra.mxu0 %v895
    %944 = vmatprep.subr.mxu0 0.0
    %945 = vmatpush1.msra.mxu0 %v894
    %946 = vmatprep.subr.mxu0 0.0
    %947 = vmatpush1.msra.mxu0 %v893
    %948 = vmatprep.subr.mxu0 0.0
    %949 = vmatpush2.msra.mxu0 0.0
    %950 = vmatprep.subr.mxu0 0.0
    %951 = vmatpush2.msra.mxu0 0.0
    %952 = vmatprep.subr.mxu0 0.0
    %953 = vmatpush2.msra.mxu0 0.0
    %954 = vmatprep.subr.mxu0 0.0
    %955 = vmatpush2.msra.mxu0 0.0
    %956 = vmatprep.subr.mxu0 0.0
    %957 = vmatpush2.msra.mxu0 0.0
    %958 = vmatprep.subr.mxu0 0.0
    %959 = vmatpush2.msra.mxu0 0.0
    %960 = vmatprep.subr.mxu0 0.0
    %961 = vmatpush2.msra.mxu0 0.0
    %962 = vmatprep.subr.mxu0 0.0
    %963 = vmatpush2.msra.mxu0 0.0
    %964 = vmatprep.subr.mxu0 0.0
    %965 = vmatpush2.msra.mxu0 0.0
    %966 = vmatprep.subr.mxu0 0.0
    %967 = vmatpush2.msra.mxu0 0.0
    %968 = vmatprep.subr.mxu0 0.0
    %969 = vmatpush2.msra.mxu0 0.0
    %970 = vmatprep.subr.mxu0 0.0
    %971 = vmatpush2.msra.mxu0 0.0
    %972 = vmatprep.subr.mxu0 0.0
    %973 = vmatpush2.msra.mxu0 0.0
    %974 = vmatprep.subr.mxu0 0.0
    %975 = vmatpush2.msra.mxu0 0.0
    %976 = vmatprep.subr.mxu0 0.0
    %977 = vmatpush2.msra.mxu0 0.0
    %978 = vmatprep.subr.mxu0 0.0
    %979 = vmatpush2.msra.mxu0 0.0
    %980 = vmatprep.mubr.f32.mxu0 0.0
    %981 = vmatmul.mubr.f32.gmra.mxu0 %v781
    %v982 = vpop.f32.mrf.mxu0
    %v983 = vadd.f32 %v914, %v982
    %v984 = vpop.f32.mrf.mxu0
    %985 = vmatprep.mubr.f32.mxu0 0.0
    %986 = vmatmul.mubr.f32.gmra.mxu0 %v782
    %v987 = vpop.f32.mrf.mxu0
    %v988 = vadd.f32 %v914, %v987
    %v989 = vpop.f32.mrf.mxu0
    %990 = vdwg.mxu0
    %v991 = vxor.u32 %v983, 2147483648
    %v992 = vxor.u32 %v988, 2147483648
    %v993 = vmul.f32 %v991, 1.442695
    %v994 = vpow.pop %v993
    %v995 = vmul.f32 %v992, 1.442695
    %v996 = vpow.pop %v995
    %v997 = vadd.f32 %v994, 1.0
    %v998 = vadd.f32 %v996, 1.0
    %v999 = vrcp.pop %v997
    %v1000 = vmul.f32 1.0, %v999
    %v1001 = vrcp.pop %v998
    %v1002 = vmul.f32 1.0, %v1001
    %v1003 = vmul.f32 %v890, %v681
    %v1004 = vmul.f32 %v892, %v682
    %v1005 = vadd.f32 %v1003, %v77
    %v1006 = vadd.f32 %v1004, %v78
    %1007 = vst [vmem:[#allocation8] sm:$0xff] %v1005
    %1008 = vst [vmem:[#allocation8 + $0x8] sm:$0xff] %v1006
    %vm1009 = vcmask 261120
    %1010 = vst.msk [vmem:[#allocation9] sm:$0xff] %vm1009, %v1000
    %1011 = vst.msk [vmem:[#allocation9 + $0x8] sm:$0xff] %vm1009, %v1002
    // Predicated region
    $region50: #{tpu_custom_call.1} parent=1 // pred_check
      _
    $region51: #{tpu_custom_call.1} parent=1 // pred_check_branch
      %1013 = sbr.rel (0) target = $region53
    $region52: #{tpu_custom_call.1} parent=1 // pred_region
      %s1015 = ssub.s32 256, 256
      %1016 = vsyncadd [#allocation4], %s1015
      %s1017 = sshll.u32 [#allocation8], 4
      %s1018 = int_to_ptr.vmem [resolvable:$true] %s1017
      %1023 = dma.vmem_to_hbm [thread:$0]  %s1018, 256, %s9, [#allocation4], 128, 128, 8
    $region53: #{tpu_custom_call.1} parent=1 // pred_fallthru
      _
    // Predicated region
    $region54: #{tpu_custom_call.1} parent=1 // pred_check
      _
    $region55: #{tpu_custom_call.1} parent=1 // pred_check_branch
      %1025 = sbr.rel (0) target = $region57
    $region56: #{tpu_custom_call.1} parent=1 // pred_region
      %s1027 = ssub.s32 256, 256
      %1028 = vsyncadd [#allocation10], %s1027
      %s1029 = sshll.u32 [#allocation9], 4
      %s1030 = int_to_ptr.vmem [resolvable:$true] %s1029
      %1035 = dma.vmem_to_hbm [thread:$0]  %s1030, 256, %s10, [#allocation10], 128, 128, 8
    $region57: #{tpu_custom_call.1} parent=1 // pred_fallthru
      _
    // Predicated region
    $region58: #{tpu_custom_call.1} parent=1 // pred_check
      _
    $region59: #{tpu_custom_call.1} parent=1 // pred_check_branch
      %1037 = sbr.rel (0) target = $region61
    $region60: #{tpu_custom_call.1} parent=1 // pred_region
      %1038 = dma.done [#allocation4], 256
    $region61: #{tpu_custom_call.1} parent=1 // pred_fallthru
      _
    // Predicated region
    $region62: #{tpu_custom_call.1} parent=1 // pred_check
      _
    $region63: #{tpu_custom_call.1} parent=1 // pred_check_branch
      %1040 = sbr.rel (0) target = $region65
    $region64: #{tpu_custom_call.1} parent=1 // pred_region
      %1041 = dma.done [#allocation10], 256
    $region65: #{tpu_custom_call.1} parent=1 // pred_fallthru
      _
    %1042 = vsyncpa [#allocation3], 1
    %1043 = vsyncpa [#allocation6], 1
    %1044 = vsyncpa [#allocation4], 1
    %1045 = vsyncpa [#allocation10], 1

</llo_original>
